<compile_context>
chip_gen: v6e
topology: v6e:2x2x1
jax: 0.10.0
libtpu: 0.0.40
codegen_flags: <defaults>
</compile_context>

<pallas_src>
import functools

import jax
import jax.numpy as jnp
from jax.experimental import pallas as pl
from jax.experimental.pallas import tpu as pltpu


# Default desired tile sizes for the forward GEMM (review: tm 512 amortizes
# weight re-streaming on v5e/v6e for prefill while staying inside v7x's
# smaller 64 MiB VMEM with bf16).
_TM_DEFAULT = 512
_TN_DEFAULT = 512
_TK_DEFAULT = 512

# Setup-path (rotation) matmul tiles, f32.
_SETUP_TM = 256
_SETUP_TN = 512
_SETUP_TK = 512


def _round_up(x, m):
    return (x + m - 1) // m * m


@functools.lru_cache(maxsize=None)
def _vmem_limit_bytes():
    """Per-generation scoped-VMEM budget: ~96 MiB on v5e/v6e, ~48 MiB on v7x."""
    try:
        cap = int(pltpu.get_tpu_info().vmem_capacity_bytes)
        return min(cap * 3 // 4, 100 * 1024 * 1024)
    except Exception:
        # Conservative fallback valid on every generation.
        return 32 * 1024 * 1024


def _sublane_align(dtype):
    """Sublane packing of the dtype: 8 for f32, 16 for bf16, 32 for fp8/int8."""
    bits = jnp.dtype(dtype).itemsize * 8
    return max(8, 256 // bits)


def _tile_dim(d, desired, align):
    """Pick a tile size (multiple of `align` or full padded dim) + padded dim."""
    t = min(desired, _round_up(d, align))
    return t, _round_up(d, t)


def _choose_m_tile(m, align, desired):
    """Minimal sublane-aligned round-up for small M; fixed `desired` tile else."""
    mp_min = _round_up(m, align)
    if mp_min <= desired:
        return mp_min, mp_min
    return desired, _round_up(m, desired)


def _pad2d(a, rows, cols):
    r, c = a.shape
    if r == rows and c == cols:
        return a
    return jnp.pad(a, ((0, rows - r), (0, cols - c)))


# ---------------------------------------------------------------------------
# Tiled matmul kernel: O[M,N] = A[M,K] @ B[K,N]   (rotation setup path, f32)
# ---------------------------------------------------------------------------
def _matmul_kernel(a_ref, b_ref, o_ref, acc_ref):
    @pl.when(pl.program_id(2) == 0)
    def _():
        acc_ref[...] = jnp.zeros_like(acc_ref)

    acc_ref[...] += jnp.dot(
        a_ref[...], b_ref[...], preferred_element_type=jnp.float32
    )

    @pl.when(pl.program_id(2) == pl.num_programs(2) - 1)
    def _():
        o_ref[...] = acc_ref[...].astype(o_ref.dtype)


def pallas_matmul(a, b, out_dtype=None):
    M, K = a.shape
    K2, N = b.shape
    assert K == K2
    out_dtype = out_dtype or a.dtype

    tm, Mp = _tile_dim(M, _SETUP_TM, 8)
    tn, Np = _tile_dim(N, _SETUP_TN, 128)
    tk, Kp = _tile_dim(K, _SETUP_TK, 128)

    a_p = _pad2d(a, Mp, Kp)
    b_p = _pad2d(b, Kp, Np)

    cost = pl.CostEstimate(
        flops=int(2 * Mp * Np * Kp),
        transcendentals=0,
        bytes_accessed=int(
            a_p.size * a_p.dtype.itemsize
            + b_p.size * b_p.dtype.itemsize
            + Mp * Np * jnp.dtype(out_dtype).itemsize
        ),
    )

    out = pl.pallas_call(
        _matmul_kernel,
        out_shape=jax.ShapeDtypeStruct((Mp, Np), out_dtype),
        grid_spec=pltpu.PrefetchScalarGridSpec(
            num_scalar_prefetch=0,
            grid=(Mp // tm, Np // tn, Kp // tk),
            in_specs=[
                pl.BlockSpec((tm, tk), lambda i, j, k: (i, k)),
                pl.BlockSpec((tk, tn), lambda i, j, k: (k, j)),
            ],
            out_specs=pl.BlockSpec((tm, tn), lambda i, j, k: (i, j)),
            scratch_shapes=[pltpu.VMEM((tm, tn), jnp.float32)],
        ),
        compiler_params=pltpu.CompilerParams(
            dimension_semantics=("parallel", "parallel", "arbitrary"),
            vmem_limit_bytes=_vmem_limit_bytes(),
        ),
        cost_estimate=cost,
    )(a_p, b_p)

    if (Mp, Np) != (M, N):
        out = out[:M, :N]
    return out


# ---------------------------------------------------------------------------
# Forward kernels: O[M,N] = X[M,K] @ Wt[K,N] + b[1,N]
# Weight is presented already transposed -> native MXU matmul, lane-dense N.
# ---------------------------------------------------------------------------
def _linear_resident_kernel(x_ref, w_ref, b_ref, o_ref):
    # Whole weight resident in VMEM (constant index map): no K loop needed.
    w = w_ref[...]
    if w_ref.dtype != x_ref.dtype:          # e.g. fp8 weight storage on v7x
        w = w.astype(x_ref.dtype)
    acc = jnp.dot(x_ref[...], w, preferred_element_type=jnp.float32)
    o_ref[...] = (acc + b_ref[...]).astype(o_ref.dtype)


def _linear_stream_kernel(x_ref, w_ref, b_ref, o_ref, acc_ref):
    @pl.when(pl.program_id(2) == 0)
    def _():
        acc_ref[...] = jnp.zeros_like(acc_ref)

    w = w_ref[...]
    if w_ref.dtype != x_ref.dtype:          # e.g. fp8 weight storage on v7x
        w = w.astype(x_ref.dtype)
    acc_ref[...] += jnp.dot(x_ref[...], w, preferred_element_type=jnp.float32)

    @pl.when(pl.program_id(2) == pl.num_programs(2) - 1)
    def _():
        o_ref[...] = (acc_ref[...] + b_ref[...]).astype(o_ref.dtype)


# ---------------------------------------------------------------------------
# rotate_weight — same semantics as the torch helper (f32 instead of f64).
# ---------------------------------------------------------------------------
def rotate_weight(weight, Q, pre=True):
    dtype = weight.dtype
    out_f, in_f = weight.shape
    q = Q.shape[0]
    w = weight.astype(jnp.float32)
    Qf = Q.astype(jnp.float32)
    head_wise = (in_f != q) if pre else (out_f != q)

    if pre:
        if head_wise:
            assert in_f % q == 0, "head-wise pre-rotation requires in_features % q == 0"
            w2 = w.reshape(out_f * (in_f // q), q)
            w = pallas_matmul(w2, Qf, out_dtype=jnp.float32).reshape(out_f, in_f)
        else:
            w = pallas_matmul(w, Qf, out_dtype=jnp.float32)
    else:
        if head_wise:
            assert out_f % q == 0, "head-wise post-rotation requires out_features % q == 0"
            # Block-diagonal per-head Q^T @ w_head: setup-only glue, plain JAX.
            w3 = w.reshape(out_f // q, q, in_f)
            w = jnp.einsum("ba,hbi->hai", Qf, w3).reshape(out_f, in_f)
        else:
            w = pallas_matmul(jnp.transpose(Qf), w, out_dtype=jnp.float32)
    return w.astype(dtype)


def rotate_bias(bias, Q):
    """Post-rotation of the bias (one-time precompute, plain JAX GEMV)."""
    dtype = bias.dtype
    out_f = bias.shape[0]
    q = Q.shape[0]
    b = bias.astype(jnp.float32)
    Qf = Q.astype(jnp.float32)
    if out_f == q:
        b = (b[None, :] @ Qf)[0]                      # == Q^T b
    else:
        assert out_f % q == 0
        b = (b.reshape(out_f // q, q) @ Qf).reshape(out_f)
    return b.astype(dtype)


# ---------------------------------------------------------------------------
# RotateLinear
# ---------------------------------------------------------------------------
class RotateLinearPallas:
    def __init__(self, weight, bias=None, Q_pre=None, Q_post=None,
                 compute_dtype=jnp.bfloat16, weight_dtype=None,
                 out_dtype=None, weight_resident=None):
        """compute_dtype: matmul dtype for x and (by default) the cached weight
        (bf16 default; f32 accumulation is always used).
        weight_dtype: storage dtype of the cached weight; pass e.g.
        jnp.float8_e4m3fn on v7x to halve weight HBM traffic (cast in-kernel).
        out_dtype: output dtype (default: x.dtype; pass bf16 to halve writeback).
        weight_resident: force/disable the weight-resident path (None = auto)."""
        self.weight = weight      # (out_features, in_features)
        self.bias = bias          # (out_features,) or None
        self.Q_pre = Q_pre        # (q, q) or None
        self.Q_post = Q_post      # (q, q) or None
        self.compute_dtype = compute_dtype
        self.out_dtype = out_dtype

        # ---- one-time precompute: rotation + transposed/padded layout ----
        w_rot, b_rot = self._compute_rotation()

        N, K = w_rot.shape
        self._N, self._K = N, K
        self._vmem_limit = _vmem_limit_bytes()

        wd = weight_dtype or compute_dtype or w_rot.dtype
        w_bytes = jnp.dtype(wd).itemsize
        Kp_min = _round_up(K, 128)
        Np_min = _round_up(N, 128)

        if weight_resident is None:
            # /4: room for a (possible) second weight buffer + x/out tiles.
            weight_resident = Kp_min * Np_min * w_bytes <= self._vmem_limit // 4
        self._resident = bool(weight_resident)

        if self._resident:
            self._Kp, self._Np = Kp_min, Np_min
            self._tk, self._tn = Kp_min, Np_min          # full K/N blocks
        else:
            self._tn, self._Np = _tile_dim(N, _TN_DEFAULT, 128)
            self._tk, self._Kp = _tile_dim(K, _TK_DEFAULT, 128)

        w_t = jnp.transpose(w_rot).astype(wd)            # (K, N), storage dtype
        self._w_t_p = _pad2d(w_t, self._Kp, self._Np)    # pre-padded once

        b = b_rot if b_rot is not None else jnp.zeros((N,), jnp.float32)
        self._b_p = jnp.pad(b.astype(jnp.float32),
                            (0, self._Np - N)).reshape(1, self._Np)
        # Note: the unpadded rotated weight/bias are NOT cached (HBM savings);
        # get_rotated_weights() recomputes on demand (setup path only).

    # -- rotation -----------------------------------------------------------
    def _compute_rotation(self):
        w = self.weight
        b = self.bias
        if self.Q_pre is not None:
            w = rotate_weight(w, self.Q_pre, pre=True)
        if self.Q_post is not None:
            w = rotate_weight(w, self.Q_post, pre=False)
            if b is not None:
                b = rotate_bias(b, self.Q_post)
        return w, b

    def get_rotated_weights(self):
        return self._compute_rotation()

    # -- forward ------------------------------------------------------------
    def _max_m_tile(self, x_itemsize, out_itemsize):
        budget = int(self._vmem_limit * 0.8)
        wb = jnp.dtype(self._w_t_p.dtype).itemsize
        if self._resident:
            fixed = 2 * self._Kp * self._Np * wb + 2 * self._Np * 4
            per_tm = 2 * self._Kp * x_itemsize + 2 * self._Np * out_itemsize
        else:
            fixed = 2 * self._tk * self._tn * wb + 2 * self._tn * 4
            per_tm = (2 * self._tk * x_itemsize
                      + 2 * self._tn * out_itemsize
                      + self._tn * 4)                    # f32 accumulator
        return max((budget - fixed) // per_tm, 8)

    def _call_resident(self, x_p, tm, out_dtype):
        Mp, Kp = x_p.shape
        Np = self._Np
        cost = pl.CostEstimate(
            flops=int(2 * Mp * Np * Kp),
            transcendentals=0,
            bytes_accessed=int(
                x_p.size * x_p.dtype.itemsize
                + self._w_t_p.size * self._w_t_p.dtype.itemsize
                + self._b_p.size * 4
                + Mp * Np * jnp.dtype(out_dtype).itemsize),
        )
        return pl.pallas_call(
            _linear_resident_kernel,
            out_shape=jax.ShapeDtypeStruct((Mp, Np), out_dtype),
            grid_spec=pltpu.PrefetchScalarGridSpec(
                num_scalar_prefetch=0,
                grid=(Mp // tm,),
                in_specs=[
                    pl.BlockSpec((tm, Kp), lambda i: (i, 0)),
                    # Constant index map -> fetched from HBM once, resident.
                    pl.BlockSpec((Kp, Np), lambda i: (0, 0)),
                    pl.BlockSpec((1, Np), lambda i: (0, 0)),
                ],
                out_specs=pl.BlockSpec((tm, Np), lambda i: (i, 0)),
            ),
            compiler_params=pltpu.CompilerParams(
                dimension_semantics=("parallel",),
                vmem_limit_bytes=self._vmem_limit,
            ),
            cost_estimate=cost,
        )(x_p, self._w_t_p, self._b_p)

    def _call_stream(self, x_p, tm, out_dtype):
        Mp, Kp = x_p.shape
        tn, tk, Np = self._tn, self._tk, self._Np
        cost = pl.CostEstimate(
            flops=int(2 * Mp * Np * Kp),
            transcendentals=0,
            bytes_accessed=int(
                x_p.size * x_p.dtype.itemsize
                + (Mp // tm) * self._w_t_p.size * self._w_t_p.dtype.itemsize
                + self._b_p.size * 4
                + Mp * Np * jnp.dtype(out_dtype).itemsize),
        )
        return pl.pallas_call(
            _linear_stream_kernel,
            out_shape=jax.ShapeDtypeStruct((Mp, Np), out_dtype),
            grid_spec=pltpu.PrefetchScalarGridSpec(
                num_scalar_prefetch=0,
                grid=(Mp // tm, Np // tn, Kp // tk),
                in_specs=[
                    pl.BlockSpec((tm, tk), lambda i, j, k: (i, k)),
                    pl.BlockSpec((tk, tn), lambda i, j, k: (k, j)),
                    pl.BlockSpec((1, tn), lambda i, j, k: (0, j)),
                ],
                out_specs=pl.BlockSpec((tm, tn), lambda i, j, k: (i, j)),
                scratch_shapes=[pltpu.VMEM((tm, tn), jnp.float32)],
            ),
            compiler_params=pltpu.CompilerParams(
                dimension_semantics=("parallel", "parallel", "arbitrary"),
                vmem_limit_bytes=self._vmem_limit,
            ),
            cost_estimate=cost,
        )(x_p, self._w_t_p, self._b_p)

    def __call__(self, x):
        out_dtype = self.out_dtype or x.dtype
        lead = x.shape[:-1]
        assert x.shape[-1] == self._K
        x2d = x.reshape(-1, self._K)
        if self.compute_dtype is not None:
            x2d = x2d.astype(self.compute_dtype)

        M = x2d.shape[0]
        align = _sublane_align(x2d.dtype)
        tm_cap = self._max_m_tile(jnp.dtype(x2d.dtype).itemsize,
                                  jnp.dtype(out_dtype).itemsize)
        tm_desired = max(align, min(_TM_DEFAULT, (tm_cap // align) * align))
        tm, Mp = _choose_m_tile(M, align, tm_desired)
        x_p = _pad2d(x2d, Mp, self._Kp)

        if self._resident:
            y_p = self._call_resident(x_p, tm, out_dtype)
        else:
            y_p = self._call_stream(x_p, tm, out_dtype)

        if (Mp, self._Np) != (M, self._N):
            y_p = y_p[:M, :self._N]
        return y_p.reshape(*lead, self._N)


# ---------------------------------------------------------------------------
if __name__ == "__main__":
    key = jax.random.PRNGKey(0)
    k_w, k_b, k_qpre, k_qpost, k_x, k_qh1, k_qh2 = jax.random.split(key, 7)

    batch, seq, in_features, out_features = 2, 8, 32, 32

    weight = jax.random.normal(k_w, (out_features, in_features), jnp.float32) * 0.1
    bias = jax.random.normal(k_b, (out_features,), jnp.float32) * 0.1

    Q_pre, _ = jnp.linalg.qr(
        jax.random.normal(k_qpre, (in_features, in_features), jnp.float32))
    Q_post, _ = jnp.linalg.qr(
        jax.random.normal(k_qpost, (out_features, out_features), jnp.float32))

    x = jax.random.normal(k_x, (batch, seq, in_features), jnp.float32)

    # pure-JAX reference of the same forward semantics (dense rotations)
    w_ref = Q_post.T @ (weight @ Q_pre)
    b_ref = Q_post.T @ bias
    y_ref = x @ w_ref.T + b_ref

    # ---- 1) default path: bf16 compute, weight-resident fast path ---------
    mod_bf16 = RotateLinearPallas(weight, bias, Q_pre=Q_pre, Q_post=Q_post)
    y1 = jax.block_until_ready(mod_bf16(x))
    assert y1.shape == (batch, seq, out_features)
    assert mod_bf16._resident
    assert jnp.allclose(y1, y_ref, atol=5e-2, rtol=5e-2), (
        float(jnp.max(jnp.abs(y1 - y_ref))))

    # ---- 2) streamed path (forced), f32 compute, tight tolerance ----------
    mod_f32 = RotateLinearPallas(weight, bias, Q_pre=Q_pre, Q_post=Q_post,
                                 compute_dtype=jnp.float32,
                                 weight_resident=False)
    y2 = jax.block_until_ready(mod_f32(x))
    assert jnp.allclose(y2, y_ref, atol=1e-4, rtol=1e-4), (
        float(jnp.max(jnp.abs(y2 - y_ref))))

    # ---- 3) head-wise pre/post rotation path (q = 16), f32 ----------------
    q = 16
    Qh_pre, _ = jnp.linalg.qr(jax.random.normal(k_qh1, (q, q), jnp.float32))
    Qh_post, _ = jnp.linalg.qr(jax.random.normal(k_qh2, (q, q), jnp.float32))
    mod_hw = RotateLinearPallas(weight, bias, Q_pre=Qh_pre, Q_post=Qh_post,
                                compute_dtype=jnp.float32)
    y3 = jax.block_until_ready(mod_hw(x))
    Qpre_full = jnp.kron(jnp.eye(in_features // q, dtype=jnp.float32), Qh_pre)
    Qpost_full = jnp.kron(jnp.eye(out_features // q, dtype=jnp.float32), Qh_post)
    w_ref3 = Qpost_full.T @ (weight @ Qpre_full)
    b_ref3 = Qpost_full.T @ bias
    y_ref3 = x @ w_ref3.T + b_ref3
    assert jnp.allclose(y3, y_ref3, atol=1e-4, rtol=1e-4), (
        float(jnp.max(jnp.abs(y3 - y_ref3))))

    print("KERNEL_OK")
</pallas_src>

<mosaic_0001>
module attributes {stable_mosaic.version = 11 : i64} {
  func.func @_matmul_kernel(%arg0: i32, %arg1: i32, %arg2: i32, %arg3: memref<32x128xf32, #tpu.memory_space<vmem>>, %arg4: memref<128x128xf32, #tpu.memory_space<vmem>>, %arg5: memref<32x128xf32, #tpu.memory_space<vmem>>, %arg6: memref<32x128xf32, #tpu.memory_space<vmem>>) attributes {dimension_semantics = [#tpu.dimension_semantics<parallel>, #tpu.dimension_semantics<parallel>, #tpu.dimension_semantics<arbitrary>], iteration_bounds = array<i64: 1, 1, 1>, scalar_prefetch = 0 : i64, scratch_operands = 1 : i64, tpu.core_type = #tpu.core_type<tc>, window_params = [{transform_indices = @transform_0, window_bounds = array<i64: 32, 128>}, {transform_indices = @transform_1, window_bounds = array<i64: 128, 128>}, {transform_indices = @transform_2, window_bounds = array<i64: 32, 128>}]} {
    %c0_i32 = arith.constant 0 : i32
    %0 = arith.cmpi eq, %arg2, %c0_i32 : i32
    %1 = arith.extui %0 : i1 to i32
    %c0_i32_0 = arith.constant 0 : i32
    %2 = arith.cmpi ne, %1, %c0_i32_0 : i32
    scf.if %2 {
      %cst_10 = arith.constant 0.000000e+00 : f32
      %12 = vector.broadcast %cst_10 : f32 to vector<32x128xf32>
      %c0_11 = arith.constant 0 : index
      %c0_12 = arith.constant 0 : index
      %13 = vector.load %arg6[%c0_11, %c0_12] : memref<32x128xf32, #tpu.memory_space<vmem>>, vector<32x128xf32>
      tpu.vector_store %arg6[%c0_11, %c0_12], %12 {strides = array<i32>} : memref<32x128xf32, #tpu.memory_space<vmem>>, vector<32x128xf32>,
    } else {
    }
    %c0 = arith.constant 0 : index
    %c0_1 = arith.constant 0 : index
    %3 = vector.load %arg6[%c0, %c0_1] : memref<32x128xf32, #tpu.memory_space<vmem>>, vector<32x128xf32>
    %c0_2 = arith.constant 0 : index
    %c0_3 = arith.constant 0 : index
    %4 = vector.load %arg3[%c0_2, %c0_3] : memref<32x128xf32, #tpu.memory_space<vmem>>, vector<32x128xf32>
    %c0_4 = arith.constant 0 : index
    %c0_5 = arith.constant 0 : index
    %5 = vector.load %arg4[%c0_4, %c0_5] : memref<128x128xf32, #tpu.memory_space<vmem>>, vector<128x128xf32>
    %cst = arith.constant dense<0.000000e+00> : vector<32x128xf32>
    %6 = tpu.matmul %4, %5, %cst {dimension_numbers = #tpu.dot_dimension_numbers<[1], [0], [0], [1], [0, 0, 1, 1], [], []>} : vector<32x128xf32>, vector<128x128xf32>, vector<32x128xf32> -> vector<32x128xf32>
    %7 = arith.addf %3, %6 : vector<32x128xf32>
    %c0_6 = arith.constant 0 : index
    %c0_7 = arith.constant 0 : index
    %8 = vector.load %arg6[%c0_6, %c0_7] : memref<32x128xf32, #tpu.memory_space<vmem>>, vector<32x128xf32>
    tpu.vector_store %arg6[%c0_6, %c0_7], %7 {strides = array<i32>} : memref<32x128xf32, #tpu.memory_space<vmem>>, vector<32x128xf32>,
    %c0_i32_8 = arith.constant 0 : i32
    %9 = arith.cmpi eq, %arg2, %c0_i32_8 : i32
    %10 = arith.extui %9 : i1 to i32
    %c0_i32_9 = arith.constant 0 : i32
    %11 = arith.cmpi ne, %10, %c0_i32_9 : i32
    scf.if %11 {
      %c0_10 = arith.constant 0 : index
      %c0_11 = arith.constant 0 : index
      %12 = vector.load %arg6[%c0_10, %c0_11] : memref<32x128xf32, #tpu.memory_space<vmem>>, vector<32x128xf32>
      %c0_12 = arith.constant 0 : index
      %c0_13 = arith.constant 0 : index
      %13 = vector.load %arg5[%c0_12, %c0_13] : memref<32x128xf32, #tpu.memory_space<vmem>>, vector<32x128xf32>
      tpu.vector_store %arg5[%c0_12, %c0_13], %12 {strides = array<i32>} : memref<32x128xf32, #tpu.memory_space<vmem>>, vector<32x128xf32>,
    } else {
    }
    return
  }
  func.func @transform_0(%arg0: i32, %arg1: i32, %arg2: i32) -> (i32, i32) {
    %c0_i32 = arith.constant 0 : i32
    return %arg0, %arg2 : i32, i32
  }
  func.func @transform_1(%arg0: i32, %arg1: i32, %arg2: i32) -> (i32, i32) {
    %c0_i32 = arith.constant 0 : i32
    return %arg2, %arg1 : i32, i32
  }
  func.func @transform_2(%arg0: i32, %arg1: i32, %arg2: i32) -> (i32, i32) {
    %c0_i32 = arith.constant 0 : i32
    return %arg0, %arg1 : i32, i32
  }
}

</mosaic_0001>

<llo_original>
// kernel: tpu_custom_call.1
$region0: #{tpu_custom_call.1}
  #allocation0 [shape = 'u32[]', space=smem, size = 0x4, offset = 0x4, fixed_abs, tag = 'smem constant byte address 0x4 - core index']
  #allocation1 [shape = 'u32[144,128]{1,0:T(1,128)}', space=vmem, size = 0x12000, scoped, tag = 'internal scratch']
  #allocation2 [shape = 'f32[32,128]{1,0:T(8,128)}', space=vmem, size = 0x4000, scoped, tag = 'scratch operand']
  %s0 = inlined_call_operand.hbm [shape: f32[32,128], index: 0, kind: input, shape index: {}]
  %s1 = inlined_call_operand.hbm [shape: f32[128,128], index: 1, kind: input, shape index: {}]
  %s2 = inlined_call_operand.hbm [shape: f32[32,128], index: 2, kind: output, shape index: {}]
  %s3 = sld [smem:[#allocation0]]
  $region34: #{tpu_custom_call.1} parent=0
    _
  %s5 = ssub.s32 1, %s3
  %s6 = scalar_select 0, %s5, %s3
  $region1: #{tpu_custom_call.1} parent=0
    #allocation3 [shape = 'u8[16384]{0}', space=vmem, size = 0x4000, scoped, tag = 'input window, operand 0, single buffered']
    #allocation4 [shape = 's32[1]{0}', space=sflag, size = 0x4, scoped, tag = 'scoped memory for tpu_custom_call.1']
    #allocation5 [shape = 's32[1]{0}', space=sflag, size = 0x4, scoped, tag = 'scoped memory for tpu_custom_call.1']
    #allocation6 [shape = 'u8[65536]{0}', space=vmem, size = 0x10000, scoped, tag = 'input window, operand 1, single buffered']
    #allocation7 [shape = 's32[1]{0}', space=sflag, size = 0x4, scoped, tag = 'scoped memory for tpu_custom_call.1']
    #allocation8 [shape = 'u8[16384]{0}', space=vmem, size = 0x4000, scoped, tag = 'output window, operand 0, single buffered']
    %7 = vsyncpa [#allocation4], 0
    %8 = vsyncpa [#allocation7], 0
    %9 = vsyncpa [#allocation5], 0
    // Predicated region
    $region2: #{tpu_custom_call.1} parent=1 // pred_check
      _
    $region3: #{tpu_custom_call.1} parent=1 // pred_check_branch
      %11 = sbr.rel (0) target = $region5
    $region4: #{tpu_custom_call.1} parent=1 // pred_region
      %s13 = ssub.s32 512, 512
      %14 = vsyncadd [#allocation4], %s13
      %s15 = sshll.u32 [#allocation3], 4
      %s16 = int_to_ptr.vmem [resolvable:$true] %s15
      %21 = dma.hbm_to_vmem [thread:$0]  %s0, 512, %s16, [#allocation4], 128, 128, 8
    $region5: #{tpu_custom_call.1} parent=1 // pred_fallthru
      _
    // Predicated region
    $region6: #{tpu_custom_call.1} parent=1 // pred_check
      _
    $region7: #{tpu_custom_call.1} parent=1 // pred_check_branch
      %23 = sbr.rel (0) target = $region9
    $region8: #{tpu_custom_call.1} parent=1 // pred_region
      %s25 = ssub.s32 2048, 2048
      %26 = vsyncadd [#allocation7], %s25
      %s27 = sshll.u32 [#allocation6], 4
      %s28 = int_to_ptr.vmem [resolvable:$true] %s27
      %33 = dma.hbm_to_vmem [thread:$0]  %s1, 2048, %s28, [#allocation7], 128, 128, 8
    $region9: #{tpu_custom_call.1} parent=1 // pred_fallthru
      _
    // Predicated region
    $region10: #{tpu_custom_call.1} parent=1 // pred_check
      _
    $region11: #{tpu_custom_call.1} parent=1 // pred_check_branch
      %35 = sbr.rel (0) target = $region13
    $region12: #{tpu_custom_call.1} parent=1 // pred_region
      %36 = dma.done [#allocation4], 512
    $region13: #{tpu_custom_call.1} parent=1 // pred_fallthru
      _
    // Predicated region
    $region14: #{tpu_custom_call.1} parent=1 // pred_check
      _
    $region15: #{tpu_custom_call.1} parent=1 // pred_check_branch
      %38 = sbr.rel (0) target = $region17
    $region16: #{tpu_custom_call.1} parent=1 // pred_region
      %39 = dma.done [#allocation7], 2048
    $region17: #{tpu_custom_call.1} parent=1 // pred_fallthru
      _
    %p40 = scmp.eq.s32.totalorder 0, 0
    // Predicated region
    $region18: #{tpu_custom_call.1} parent=1 // pred_check
      %p41 = pneg %p40
    $region19: #{tpu_custom_call.1} parent=1 // pred_check_branch
      %43 = sbr.rel (%p41) target = $region21
    $region20: #{tpu_custom_call.1} parent=1 // pred_region
      %44 = vst [vmem:[#allocation2] sm:$0xff] 0.0
      %45 = vst [vmem:[#allocation2 + $0x8] sm:$0xff] 0.0
      %46 = vst [vmem:[#allocation2 + $0x10] sm:$0xff] 0.0
      %47 = vst [vmem:[#allocation2 + $0x18] sm:$0xff] 0.0
    $region21: #{tpu_custom_call.1} parent=1 // pred_fallthru
      _
    %v48 = vld [vmem:[#allocation2] sm:$0xff]
    %v49 = vld [vmem:[#allocation2 + $0x8] sm:$0xff]
    %v50 = vld [vmem:[#allocation2 + $0x10] sm:$0xff]
    %v51 = vld [vmem:[#allocation2 + $0x18] sm:$0xff]
    %v52 = vld [vmem:[#allocation3] sm:$0xff]
    %v53 = vld [vmem:[#allocation3 + $0x8] sm:$0xff]
    %v54 = vld [vmem:[#allocation3 + $0x10] sm:$0xff]
    %v55 = vld [vmem:[#allocation3 + $0x18] sm:$0xff]
    %v56 = vld [vmem:[#allocation6] sm:$0xff]
    %v57 = vld [vmem:[#allocation6 + $0x8] sm:$0xff]
    %v58 = vld [vmem:[#allocation6 + $0x10] sm:$0xff]
    %v59 = vld [vmem:[#allocation6 + $0x18] sm:$0xff]
    %v60 = vld [vmem:[#allocation6 + $0x20] sm:$0xff]
    %v61 = vld [vmem:[#allocation6 + $0x28] sm:$0xff]
    %v62 = vld [vmem:[#allocation6 + $0x30] sm:$0xff]
    %v63 = vld [vmem:[#allocation6 + $0x38] sm:$0xff]
    %v64 = vld [vmem:[#allocation6 + $0x40] sm:$0xff]
    %v65 = vld [vmem:[#allocation6 + $0x48] sm:$0xff]
    %v66 = vld [vmem:[#allocation6 + $0x50] sm:$0xff]
    %v67 = vld [vmem:[#allocation6 + $0x58] sm:$0xff]
    %v68 = vld [vmem:[#allocation6 + $0x60] sm:$0xff]
    %v69 = vld [vmem:[#allocation6 + $0x68] sm:$0xff]
    %v70 = vld [vmem:[#allocation6 + $0x70] sm:$0xff]
    %v71 = vld [vmem:[#allocation6 + $0x78] sm:$0xff]
    %72 = vmatprep.subr.mxu0 0.0
    %73 = vmatpush1.msra.mxu0 %v71
    %74 = vmatprep.subr.mxu0 0.0
    %75 = vmatpush1.msra.mxu0 %v70
    %76 = vmatprep.subr.mxu0 0.0
    %77 = vmatpush1.msra.mxu0 %v69
    %78 = vmatprep.subr.mxu0 0.0
    %79 = vmatpush1.msra.mxu0 %v68
    %80 = vmatprep.subr.mxu0 0.0
    %81 = vmatpush1.msra.mxu0 %v67
    %82 = vmatprep.subr.mxu0 0.0
    %83 = vmatpush1.msra.mxu0 %v66
    %84 = vmatprep.subr.mxu0 0.0
    %85 = vmatpush1.msra.mxu0 %v65
    %86 = vmatprep.subr.mxu0 0.0
    %87 = vmatpush1.msra.mxu0 %v64
    %88 = vmatprep.subr.mxu0 0.0
    %89 = vmatpush1.msra.mxu0 %v63
    %90 = vmatprep.subr.mxu0 0.0
    %91 = vmatpush1.msra.mxu0 %v62
    %92 = vmatprep.subr.mxu0 0.0
    %93 = vmatpush1.msra.mxu0 %v61
    %94 = vmatprep.subr.mxu0 0.0
    %95 = vmatpush1.msra.mxu0 %v60
    %96 = vmatprep.subr.mxu0 0.0
    %97 = vmatpush1.msra.mxu0 %v59
    %98 = vmatprep.subr.mxu0 0.0
    %99 = vmatpush1.msra.mxu0 %v58
    %100 = vmatprep.subr.mxu0 0.0
    %101 = vmatpush1.msra.mxu0 %v57
    %102 = vmatprep.subr.mxu0 0.0
    %103 = vmatpush1.msra.mxu0 %v56
    %104 = vmatprep.subr.mxu0 0.0
    %105 = vmatpush2.msra.mxu0 0.0
    %106 = vmatprep.subr.mxu0 0.0
    %107 = vmatpush2.msra.mxu0 0.0
    %108 = vmatprep.subr.mxu0 0.0
    %109 = vmatpush2.msra.mxu0 0.0
    %110 = vmatprep.subr.mxu0 0.0
    %111 = vmatpush2.msra.mxu0 0.0
    %112 = vmatprep.subr.mxu0 0.0
    %113 = vmatpush2.msra.mxu0 0.0
    %114 = vmatprep.subr.mxu0 0.0
    %115 = vmatpush2.msra.mxu0 0.0
    %116 = vmatprep.subr.mxu0 0.0
    %117 = vmatpush2.msra.mxu0 0.0
    %118 = vmatprep.subr.mxu0 0.0
    %119 = vmatpush2.msra.mxu0 0.0
    %120 = vmatprep.subr.mxu0 0.0
    %121 = vmatpush2.msra.mxu0 0.0
    %122 = vmatprep.subr.mxu0 0.0
    %123 = vmatpush2.msra.mxu0 0.0
    %124 = vmatprep.subr.mxu0 0.0
    %125 = vmatpush2.msra.mxu0 0.0
    %126 = vmatprep.subr.mxu0 0.0
    %127 = vmatpush2.msra.mxu0 0.0
    %128 = vmatprep.subr.mxu0 0.0
    %129 = vmatpush2.msra.mxu0 0.0
    %130 = vmatprep.subr.mxu0 0.0
    %131 = vmatpush2.msra.mxu0 0.0
    %132 = vmatprep.subr.mxu0 0.0
    %133 = vmatpush2.msra.mxu0 0.0
    %134 = vmatprep.subr.mxu0 0.0
    %135 = vmatpush2.msra.mxu0 0.0
    %136 = vmatprep.mubr.f32.mxu0 0.0
    %137 = vmatmul.mubr.f32.gmra.mxu0 %v52
    %v138 = vpop.f32.mrf.mxu0
    %v139 = vadd.f32 0.0, %v138
    %v140 = vpop.f32.mrf.mxu0
    %141 = vmatprep.mubr.f32.mxu0 0.0
    %142 = vmatmul.mubr.f32.gmra.mxu0 %v53
    %v143 = vpop.f32.mrf.mxu0
    %v144 = vadd.f32 0.0, %v143
    %v145 = vpop.f32.mrf.mxu0
    %146 = vmatprep.mubr.f32.mxu0 0.0
    %147 = vmatmul.mubr.f32.gmra.mxu0 %v54
    %v148 = vpop.f32.mrf.mxu0
    %v149 = vadd.f32 0.0, %v148
    %v150 = vpop.f32.mrf.mxu0
    %151 = vmatprep.mubr.f32.mxu0 0.0
    %152 = vmatmul.mubr.f32.gmra.mxu0 %v55
    %v153 = vpop.f32.mrf.mxu0
    %v154 = vadd.f32 0.0, %v153
    %v155 = vpop.f32.mrf.mxu0
    %156 = vdwg.mxu0
    %v157 = vadd.f32 %v48, %v139
    %v158 = vadd.f32 %v49, %v144
    %v159 = vadd.f32 %v50, %v149
    %v160 = vadd.f32 %v51, %v154
    %161 = vst [vmem:[#allocation2] sm:$0xff] %v157
    %162 = vst [vmem:[#allocation2 + $0x8] sm:$0xff] %v158
    %163 = vst [vmem:[#allocation2 + $0x10] sm:$0xff] %v159
    %164 = vst [vmem:[#allocation2 + $0x18] sm:$0xff] %v160
    // Predicated region
    $region22: #{tpu_custom_call.1} parent=1 // pred_check
      %p165 = pneg %p40
    $region23: #{tpu_custom_call.1} parent=1 // pred_check_branch
      %167 = sbr.rel (%p165) target = $region25
    $region24: #{tpu_custom_call.1} parent=1 // pred_region
      %v168 = vld [vmem:[#allocation2] sm:$0xff]
      %v169 = vld [vmem:[#allocation2 + $0x8] sm:$0xff]
      %v170 = vld [vmem:[#allocation2 + $0x10] sm:$0xff]
      %v171 = vld [vmem:[#allocation2 + $0x18] sm:$0xff]
      %172 = vst [vmem:[#allocation8] sm:$0xff] %v168
      %173 = vst [vmem:[#allocation8 + $0x8] sm:$0xff] %v169
      %174 = vst [vmem:[#allocation8 + $0x10] sm:$0xff] %v170
      %175 = vst [vmem:[#allocation8 + $0x18] sm:$0xff] %v171
    $region25: #{tpu_custom_call.1} parent=1 // pred_fallthru
      _
    // Predicated region
    $region26: #{tpu_custom_call.1} parent=1 // pred_check
      _
    $region27: #{tpu_custom_call.1} parent=1 // pred_check_branch
      %177 = sbr.rel (0) target = $region29
    $region28: #{tpu_custom_call.1} parent=1 // pred_region
      %s179 = ssub.s32 512, 512
      %180 = vsyncadd [#allocation5], %s179
      %s181 = sshll.u32 [#allocation8], 4
      %s182 = int_to_ptr.vmem [resolvable:$true] %s181
      %187 = dma.vmem_to_hbm [thread:$0]  %s182, 512, %s2, [#allocation5], 128, 128, 8
    $region29: #{tpu_custom_call.1} parent=1 // pred_fallthru
      _
    // Predicated region
    $region30: #{tpu_custom_call.1} parent=1 // pred_check
      _
    $region31: #{tpu_custom_call.1} parent=1 // pred_check_branch
      %189 = sbr.rel (0) target = $region33
    $region32: #{tpu_custom_call.1} parent=1 // pred_region
      %190 = dma.done [#allocation5], 512
    $region33: #{tpu_custom_call.1} parent=1 // pred_fallthru
      _
    %191 = vsyncpa [#allocation4], 1
    %192 = vsyncpa [#allocation7], 1
    %193 = vsyncpa [#allocation5], 1

</llo_original>
